<compile_context>
chip_gen: v7x
topology: tpu7x:2x2x1
jax: 0.10.0
libtpu: 0.0.40
codegen_flags: <defaults>
</compile_context>

<pallas_src>
import jax
import jax.numpy as jnp
from jax.experimental import pallas as pl
from jax.experimental.pallas import tpu as pltpu


def _round_up(x, m):
    return ((x + m - 1) // m) * m


def _pick_tile(dim_p, cap):
    """Largest multiple-of-128 divisor of dim_p that is <= cap (min 128)."""
    best = 128
    cap = max(cap, 128)
    t = 256
    while t <= min(dim_p, cap):
        if dim_p % t == 0:
            best = t
        t += 128
    return best


def gcn_layer_kernel(a_ref, x_ref, w_ref, b_ref, o_ref, acc_ref):
    """grid = (row_tiles, k_tiles).  acc = A_hat[i, :] @ X  (f32)."""
    k = pl.program_id(1)

    @pl.when(k == 0)
    def _():
        acc_ref[...] = jnp.zeros_like(acc_ref)

    # A_hat tile (bf16) @ X tile (bf16) -> f32 accumulate on the MXU.
    acc_ref[...] += jnp.dot(a_ref[...], x_ref[...],
                            preferred_element_type=jnp.float32)

    @pl.when(k == pl.num_programs(1) - 1)
    def _():
        # Finalize: small feature transform + bias, once per output row tile.
        h = jnp.dot(acc_ref[...], w_ref[...],
                    preferred_element_type=jnp.float32)
        o_ref[...] = (h + b_ref[...]).astype(o_ref.dtype)


def normalized_adjacency(edge_index, num_nodes):
    """Dense GCN-normalized adjacency: D^{-1/2} (A + I) D^{-1/2}.

    Duplicate edges accumulate (scatter-add); self-loops are added only for
    nodes that do not already have one (matches add_remaining_self_loops).
    """
    src = edge_index[0]
    dst = edge_index[1]
    a = jnp.zeros((num_nodes, num_nodes), dtype=jnp.float32)
    a = a.at[dst, src].add(1.0)                     # message flows src -> dst
    diag = jnp.diagonal(a)
    a = a + jnp.diag(jnp.where(diag == 0.0, 1.0, 0.0))
    deg = jnp.sum(a, axis=1)
    d_inv_sqrt = jnp.where(deg > 0, jax.lax.rsqrt(deg), 0.0)
    return d_inv_sqrt[:, None] * a * d_inv_sqrt[None, :]


def layer_forward(x, edge_index, weight, bias):
    """Pallas-backed forward of the GCN `Layer`: A_hat @ X @ W + b."""
    n, c_in = x.shape
    c_out = weight.shape[1]

    a_hat = normalized_adjacency(edge_index, n)

    # Pad node dim to a 128 multiple only (minimizes wasted MXU work), then
    # pick tiles as divisors of the padded dim under a per-buffer VMEM budget.
    n_p = _round_up(n, 128)
    cin_p = _round_up(c_in, 128)
    cout_p = _round_up(c_out, 128)

    tile_m = _pick_tile(n_p, 512)                       # output row tile
    budget = 3 << 20                                    # ~3 MiB per bf16 block
    cap_k = min(budget // (2 * tile_m), budget // (2 * cin_p))
    tile_k = _pick_tile(n_p, cap_k)                     # reduction (N) tile

    # bf16 inputs (A_hat, X), f32 weights/bias; zero-pad to tile boundaries.
    a_p = jnp.zeros((n_p, n_p), jnp.bfloat16
                    ).at[:n, :n].set(a_hat.astype(jnp.bfloat16))
    x_p = jnp.zeros((n_p, cin_p), jnp.bfloat16
                    ).at[:n, :c_in].set(x.astype(jnp.bfloat16))
    w_p = jnp.zeros((cin_p, cout_p), jnp.float32
                    ).at[:c_in, :c_out].set(weight.astype(jnp.float32))
    b_p = jnp.zeros((1, cout_p), jnp.float32
                    ).at[:, :c_out].set(bias.astype(jnp.float32))

    grid = (n_p // tile_m, n_p // tile_k)

    out = pl.pallas_call(
        gcn_layer_kernel,
        out_shape=jax.ShapeDtypeStruct((n_p, cout_p), jnp.float32),
        grid_spec=pltpu.PrefetchScalarGridSpec(
            num_scalar_prefetch=0,
            grid=grid,
            in_specs=[
                pl.BlockSpec((tile_m, tile_k), lambda i, k: (i, k)),   # A_hat
                pl.BlockSpec((tile_k, cin_p), lambda i, k: (k, 0)),    # X
                pl.BlockSpec((cin_p, cout_p), lambda i, k: (0, 0)),    # W
                pl.BlockSpec((1, cout_p), lambda i, k: (0, 0)),        # bias
            ],
            out_specs=pl.BlockSpec((tile_m, cout_p), lambda i, k: (i, 0)),
            scratch_shapes=[pltpu.VMEM((tile_m, cin_p), jnp.float32)],
        ),
        compiler_params=pltpu.CompilerParams(
            dimension_semantics=("parallel", "arbitrary")),
    )(a_p, x_p, w_p, b_p)

    return out[:n, :c_out]


def reference_forward(x, edge_index, weight, bias):
    """Plain-JAX reference following the same dtype path (bf16 A/X, f32 acc)."""
    a_hat = normalized_adjacency(edge_index, x.shape[0]).astype(jnp.bfloat16)
    agg = jnp.dot(a_hat, x.astype(jnp.bfloat16),
                  preferred_element_type=jnp.float32)
    return jnp.dot(agg, weight, preferred_element_type=jnp.float32) + bias


if __name__ == "__main__":
    key = jax.random.PRNGKey(0)
    k_x, k_w, k_b, k_e = jax.random.split(key, 4)

    # Small synthetic graph consistent with the module's channel arguments.
    # 600 nodes -> padded to 640 (5 row tiles of 128, single full-width
    # reduction tile): exercises tiling, the accumulator and the
    # pad-and-slice path.
    num_nodes = 600
    in_channels = 8
    out_channels = 32
    num_edges = 3000

    x = jax.random.normal(k_x, (num_nodes, in_channels), dtype=jnp.float32)
    weight = jax.random.normal(k_w, (in_channels, out_channels),
                               dtype=jnp.float32) * (1.0 / jnp.sqrt(in_channels))
    bias = jax.random.normal(k_b, (1, out_channels), dtype=jnp.float32) * 0.1
    edge_index = jax.random.randint(k_e, (2, num_edges), 0, num_nodes,
                                    dtype=jnp.int32)

    out = layer_forward(x, edge_index, weight, bias)
    jax.block_until_ready(out)

    ref = reference_forward(x, edge_index, weight, bias)
    assert out.shape == (num_nodes, out_channels)
    assert jnp.allclose(out, ref, atol=5e-2, rtol=5e-2)

    print("KERNEL_OK")
</pallas_src>

<mosaic_0001>
module attributes {stable_mosaic.version = 11 : i64} {
  func.func @gcn_layer_kernel(%arg0: i32, %arg1: i32, %arg2: memref<128x640xbf16, #tpu.memory_space<vmem>>, %arg3: memref<640x128xbf16, #tpu.memory_space<vmem>>, %arg4: memref<128x128xf32, #tpu.memory_space<vmem>>, %arg5: memref<1x128xf32, #tpu.memory_space<vmem>>, %arg6: memref<128x128xf32, #tpu.memory_space<vmem>>, %arg7: memref<128x128xf32, #tpu.memory_space<vmem>>) attributes {dimension_semantics = [#tpu.dimension_semantics<parallel>, #tpu.dimension_semantics<arbitrary>], iteration_bounds = array<i64: 5, 1>, scalar_prefetch = 0 : i64, scratch_operands = 1 : i64, tpu.core_type = #tpu.core_type<tc>, window_params = [{transform_indices = @transform_0, window_bounds = array<i64: 128, 640>}, {transform_indices = @transform_1, window_bounds = array<i64: 640, 128>}, {pipeline_mode = #tpu.pipeline_mode<synchronous>, transform_indices = @transform_2, window_bounds = array<i64: 128, 128>}, {pipeline_mode = #tpu.pipeline_mode<synchronous>, transform_indices = @transform_3, window_bounds = array<i64: 1, 128>}, {transform_indices = @transform_4, window_bounds = array<i64: 128, 128>}]} {
    %c0_i32 = arith.constant 0 : i32
    %0 = arith.cmpi eq, %arg1, %c0_i32 : i32
    %1 = arith.extui %0 : i1 to i32
    %c0_i32_0 = arith.constant 0 : i32
    %2 = arith.cmpi ne, %1, %c0_i32_0 : i32
    scf.if %2 {
      %cst_10 = arith.constant 0.000000e+00 : f32
      %12 = vector.broadcast %cst_10 : f32 to vector<128x128xf32>
      %c0_11 = arith.constant 0 : index
      %c0_12 = arith.constant 0 : index
      %13 = vector.load %arg7[%c0_11, %c0_12] : memref<128x128xf32, #tpu.memory_space<vmem>>, vector<128x128xf32>
      tpu.vector_store %arg7[%c0_11, %c0_12], %12 {strides = array<i32>} : memref<128x128xf32, #tpu.memory_space<vmem>>, vector<128x128xf32>,
    } else {
    }
    %c0 = arith.constant 0 : index
    %c0_1 = arith.constant 0 : index
    %3 = vector.load %arg7[%c0, %c0_1] : memref<128x128xf32, #tpu.memory_space<vmem>>, vector<128x128xf32>
    %c0_2 = arith.constant 0 : index
    %c0_3 = arith.constant 0 : index
    %4 = vector.load %arg2[%c0_2, %c0_3] : memref<128x640xbf16, #tpu.memory_space<vmem>>, vector<128x640xbf16>
    %c0_4 = arith.constant 0 : index
    %c0_5 = arith.constant 0 : index
    %5 = vector.load %arg3[%c0_4, %c0_5] : memref<640x128xbf16, #tpu.memory_space<vmem>>, vector<640x128xbf16>
    %cst = arith.constant dense<0.000000e+00> : vector<128x128xf32>
    %6 = tpu.matmul %4, %5, %cst {dimension_numbers = #tpu.dot_dimension_numbers<[1], [0], [0], [1], [0, 0, 1, 1], [], []>} : vector<128x640xbf16>, vector<640x128xbf16>, vector<128x128xf32> -> vector<128x128xf32>
    %7 = arith.addf %3, %6 : vector<128x128xf32>
    %c0_6 = arith.constant 0 : index
    %c0_7 = arith.constant 0 : index
    %8 = vector.load %arg7[%c0_6, %c0_7] : memref<128x128xf32, #tpu.memory_space<vmem>>, vector<128x128xf32>
    tpu.vector_store %arg7[%c0_6, %c0_7], %7 {strides = array<i32>} : memref<128x128xf32, #tpu.memory_space<vmem>>, vector<128x128xf32>,
    %c0_i32_8 = arith.constant 0 : i32
    %9 = arith.cmpi eq, %arg1, %c0_i32_8 : i32
    %10 = arith.extui %9 : i1 to i32
    %c0_i32_9 = arith.constant 0 : i32
    %11 = arith.cmpi ne, %10, %c0_i32_9 : i32
    scf.if %11 {
      %c0_10 = arith.constant 0 : index
      %c0_11 = arith.constant 0 : index
      %12 = vector.load %arg7[%c0_10, %c0_11] : memref<128x128xf32, #tpu.memory_space<vmem>>, vector<128x128xf32>
      %c0_12 = arith.constant 0 : index
      %c0_13 = arith.constant 0 : index
      %13 = vector.load %arg4[%c0_12, %c0_13] : memref<128x128xf32, #tpu.memory_space<vmem>>, vector<128x128xf32>
      %cst_14 = arith.constant dense<0.000000e+00> : vector<128x128xf32>
      %14 = tpu.matmul %12, %13, %cst_14 {dimension_numbers = #tpu.dot_dimension_numbers<[1], [0], [0], [1], [0, 0, 1, 1], [], []>} : vector<128x128xf32>, vector<128x128xf32>, vector<128x128xf32> -> vector<128x128xf32>
      %c0_15 = arith.constant 0 : index
      %c0_16 = arith.constant 0 : index
      %15 = vector.load %arg5[%c0_15, %c0_16] : memref<1x128xf32, #tpu.memory_space<vmem>>, vector<1x128xf32>
      %16 = vector.broadcast %15 : vector<1x128xf32> to vector<128x128xf32>
      %17 = arith.addf %14, %16 : vector<128x128xf32>
      %c0_17 = arith.constant 0 : index
      %c0_18 = arith.constant 0 : index
      %18 = vector.load %arg6[%c0_17, %c0_18] : memref<128x128xf32, #tpu.memory_space<vmem>>, vector<128x128xf32>
      tpu.vector_store %arg6[%c0_17, %c0_18], %17 {strides = array<i32>} : memref<128x128xf32, #tpu.memory_space<vmem>>, vector<128x128xf32>,
    } else {
    }
    return
  }
  func.func @transform_0(%arg0: i32, %arg1: i32) -> (i32, i32) {
    %c0_i32 = arith.constant 0 : i32
    return %arg0, %arg1 : i32, i32
  }
  func.func @transform_1(%arg0: i32, %arg1: i32) -> (i32, i32) {
    %c0_i32 = arith.constant 0 : i32
    %c0_i32_0 = arith.constant 0 : i32
    return %arg1, %c0_i32 : i32, i32
  }
  func.func @transform_2(%arg0: i32, %arg1: i32) -> (i32, i32) {
    %c0_i32 = arith.constant 0 : i32
    %c0_i32_0 = arith.constant 0 : i32
    %c0_i32_1 = arith.constant 0 : i32
    return %c0_i32, %c0_i32_0 : i32, i32
  }
  func.func @transform_3(%arg0: i32, %arg1: i32) -> (i32, i32) {
    %c0_i32 = arith.constant 0 : i32
    %c0_i32_0 = arith.constant 0 : i32
    %c0_i32_1 = arith.constant 0 : i32
    return %c0_i32, %c0_i32_0 : i32, i32
  }
  func.func @transform_4(%arg0: i32, %arg1: i32) -> (i32, i32) {
    %c0_i32 = arith.constant 0 : i32
    %c0_i32_0 = arith.constant 0 : i32
    return %arg0, %c0_i32 : i32, i32
  }
}

</mosaic_0001>

<llo_original>
// kernel: tpu_custom_call.1
$region0: #{tpu_custom_call.1}
  #allocation0 [shape = 'u32[]', space=smem, size = 0x4, offset = 0x4, fixed_abs, tag = 'smem constant byte address 0x4 - core index']
  #allocation1 [shape = 'u32[144,128]{1,0:T(1,128)}', space=vmem, size = 0x12000, scoped, tag = 'internal scratch']
  #allocation2 [shape = 'f32[128,128]{1,0:T(8,128)}', space=vmem, size = 0x10000, scoped, tag = 'scratch operand']
  %s0 = inlined_call_operand.hbm [shape: bf16[640,640], index: 0, kind: input, shape index: {}]
  %s1 = inlined_call_operand.hbm [shape: bf16[640,128], index: 1, kind: input, shape index: {}]
  %s2 = inlined_call_operand.hbm [shape: f32[128,128], index: 2, kind: input, shape index: {}]
  %s3 = inlined_call_operand.vmem [shape: f32[1,128], index: 3, kind: input, shape index: {}]
  %s4 = inlined_call_operand.hbm [shape: f32[640,128], index: 4, kind: output, shape index: {}]
  %s5 = sld [smem:[#allocation0]]
  $region69: #{tpu_custom_call.1} parent=0
    _
  %s7 = ssub.s32 1, %s5
  %s8 = scalar_select 0, %s7, %s5
  $region1: #{tpu_custom_call.1} parent=0
    #allocation3 [shape = 'u8[327680]{0}', space=vmem, size = 0x50000, scoped, tag = 'input window, operand 0']
    #allocation4 [shape = 's32[2]{0}', space=sflag, size = 0x8, scoped, tag = 'scoped memory for tpu_custom_call.1']
    #allocation5 [shape = 's32[2]{0}', space=sflag, size = 0x8, scoped, tag = 'scoped memory for tpu_custom_call.1']
    #allocation6 [shape = 'u8[163840]{0}', space=vmem, size = 0x28000, scoped, tag = 'input window, operand 1, single buffered']
    #allocation7 [shape = 's32[1]{0}', space=sflag, size = 0x4, scoped, tag = 'scoped memory for tpu_custom_call.1']
    #allocation8 [shape = 'u8[65536]{0}', space=vmem, size = 0x10000, scoped, tag = 'input window, operand 2, single buffered']
    #allocation9 [shape = 'u8[131072]{0}', space=vmem, size = 0x20000, scoped, tag = 'output window, operand 0']
    %9 = vsyncpa [#allocation4], 0
    %s10 = scalar_lea.sflag [#allocation4], 1
    %11 = vsyncpa %s10, 0
    %12 = vsyncpa [#allocation7], 0
    %13 = vsyncpa [#allocation5], 0
    %s14 = scalar_lea.sflag [#allocation5], 1
    %15 = vsyncpa %s14, 0
    loop: start=0, step=1, limit=7
    $region2: #{tpu_custom_call.1} parent=1 // loop_pre_header
      _
    $region3: #{tpu_custom_call.1} parent=1 // loop_header
      %s17 = sphi 0, %s21
      %p18 = scmp.ge.s32.totalorder %s17, 7
      %s24 = sphi 0, %s36
      %s25 = sphi 0, %s32
      %s26 = sphi 0, %s24
      %s27 = sphi 0, %s25
      %s28 = sphi 0, %s26
      %s29 = sphi 0, %s27
      %s41 = sphi 0, %s43
      %s44 = sphi 0, %s41
      %s45 = sphi 0, %s44
      %s61 = sphi 0, %s45
      %s67 = sphi 0, %s69
      %s70 = sphi 0, %s67
      %s71 = sphi 0, %s70
      %s87 = sphi 0, %s71
      %s91 = sphi 0, %s91
      %s93 = sphi 0, %s91
      %s94 = sphi 0, %s93
      %s108 = sphi 0, %s94
      %s112 = sphi 0, %s112
      %s114 = sphi 0, %s112
      %s115 = sphi 0, %s114
      %s129 = sphi 0, %s115
      %s135 = sphi 0, %s137
      %s138 = sphi 0, %s135
      %s139 = sphi 0, %s138
      %s155 = sphi 0, %s139
    $region4: #{tpu_custom_call.1} parent=1 // loop_header_branch
      %20 = sbr.rel (%p18) target = $region8
    $region5: #{tpu_custom_call.1} parent=1 // loop_body
      %s22 = ssub.s32 %s17, 1
      %s23 = ssub.s32 %s17, 2
      %s30 = sadd.s32 1, %s25
      %p31 = scmp.ge.s32.totalorder %s30, 1
      %s32 = scalar_select %p31, 0, %s30
      %s33 = sadd.s32 1, %s24
      %s34 = scalar_select %p31, %s33, %s24
      %p35 = scmp.ge.s32.totalorder %s34, 5
      %s36 = scalar_select %p35, 0, %s34
      %s37 = ssub.s32 %s24, %s36
      %s38 = ssub.s32 %s25, %s32
      %s39 = sor.u32 %s37, %s38
      %p40 = scmp.eq.s32.totalorder %s39, 0
      %s42 = sadd.s32 %s41, 1
      %s43 = scalar_select %p40, %s41, %s42
      %p46 = pneg %p40
      %p47 = scmp.eq.s32.totalorder %s17, 4
      %p48 = por %p46, %p47
      %p49 = scmp.ne.s32.totalorder %s41, %s44
      %p50 = scmp.eq.s32.totalorder %s17, 0
      %p51 = por %p49, %p50
      %p52 = scmp.ne.s32.totalorder %s41, %s44
      %p53 = scmp.eq.s32.totalorder %s22, 4
      %p54 = por %p52, %p53
      %p55 = scmp.ne.s32.totalorder %s44, %s45
      %p56 = scmp.eq.s32.totalorder %s22, 0
      %p57 = por %p55, %p56
      %p58 = scmp.ne.s32.totalorder %s44, %s45
      %p59 = scmp.eq.s32.totalorder %s23, 4
      %p60 = por %p58, %p59
      %p62 = scmp.ne.s32.totalorder %s45, %s61
      %p63 = scmp.eq.s32.totalorder %s23, 0
      %p64 = por %p62, %p63
      %s65 = ssub.s32 %s25, %s32
      %p66 = scmp.eq.s32.totalorder %s65, 0
      %s68 = sadd.s32 %s67, 1
      %s69 = scalar_select %p66, %s67, %s68
      %p72 = pneg %p66
      %p73 = scmp.eq.s32.totalorder %s17, 4
      %p74 = por %p72, %p73
      %p75 = scmp.ne.s32.totalorder %s67, %s70
      %p76 = scmp.eq.s32.totalorder %s17, 0
      %p77 = por %p75, %p76
      %p78 = scmp.ne.s32.totalorder %s67, %s70
      %p79 = scmp.eq.s32.totalorder %s22, 4
      %p80 = por %p78, %p79
      %p81 = scmp.ne.s32.totalorder %s70, %s71
      %p82 = scmp.eq.s32.totalorder %s22, 0
      %p83 = por %p81, %p82
      %p84 = scmp.ne.s32.totalorder %s70, %s71
      %p85 = scmp.eq.s32.totalorder %s23, 4
      %p86 = por %p84, %p85
      %p88 = scmp.ne.s32.totalorder %s71, %s87
      %p89 = scmp.eq.s32.totalorder %s23, 0
      %p90 = por %p88, %p89
      %s92 = sadd.s32 %s91, 1
      %p95 = scmp.eq.s32.totalorder %s17, 4
      %p96 = scmp.ne.s32.totalorder %s91, %s93
      %p97 = scmp.eq.s32.totalorder %s17, 0
      %p98 = por %p96, %p97
      %p99 = scmp.ne.s32.totalorder %s91, %s93
      %p100 = scmp.eq.s32.totalorder %s22, 4
      %p101 = por %p99, %p100
      %p102 = scmp.ne.s32.totalorder %s93, %s94
      %p103 = scmp.eq.s32.totalorder %s22, 0
      %p104 = por %p102, %p103
      %p105 = scmp.ne.s32.totalorder %s93, %s94
      %p106 = scmp.eq.s32.totalorder %s23, 4
      %p107 = por %p105, %p106
      %p109 = scmp.ne.s32.totalorder %s94, %s108
      %p110 = scmp.eq.s32.totalorder %s23, 0
      %p111 = por %p109, %p110
      %s113 = sadd.s32 %s112, 1
      %p116 = scmp.eq.s32.totalorder %s17, 4
      %p117 = scmp.ne.s32.totalorder %s112, %s114
      %p118 = scmp.eq.s32.totalorder %s17, 0
      %p119 = por %p117, %p118
      %p120 = scmp.ne.s32.totalorder %s112, %s114
      %p121 = scmp.eq.s32.totalorder %s22, 4
      %p122 = por %p120, %p121
      %p123 = scmp.ne.s32.totalorder %s114, %s115
      %p124 = scmp.eq.s32.totalorder %s22, 0
      %p125 = por %p123, %p124
      %p126 = scmp.ne.s32.totalorder %s114, %s115
      %p127 = scmp.eq.s32.totalorder %s23, 4
      %p128 = por %p126, %p127
      %p130 = scmp.ne.s32.totalorder %s115, %s129
      %p131 = scmp.eq.s32.totalorder %s23, 0
      %p132 = por %p130, %p131
      %s133 = ssub.s32 %s24, %s36
      %p134 = scmp.eq.s32.totalorder %s133, 0
      %s136 = sadd.s32 %s135, 1
      %s137 = scalar_select %p134, %s135, %s136
      %p140 = pneg %p134
      %p141 = scmp.eq.s32.totalorder %s17, 4
      %p142 = por %p140, %p141
      %p143 = scmp.ne.s32.totalorder %s135, %s138
      %p144 = scmp.eq.s32.totalorder %s17, 0
      %p145 = por %p143, %p144
      %p146 = scmp.ne.s32.totalorder %s135, %s138
      %p147 = scmp.eq.s32.totalorder %s22, 4
      %p148 = por %p146, %p147
      %p149 = scmp.ne.s32.totalorder %s138, %s139
      %p150 = scmp.eq.s32.totalorder %s22, 0
      %p151 = por %p149, %p150
      %p152 = scmp.ne.s32.totalorder %s138, %s139
      %p153 = scmp.eq.s32.totalorder %s23, 4
      %p154 = por %p152, %p153
      %p156 = scmp.ne.s32.totalorder %s139, %s155
      %p157 = scmp.eq.s32.totalorder %s23, 0
      %p158 = por %p156, %p157
      %p159 = scmp.le.s32.totalorder 1, %s17
      %p160 = scmp.lt.s32.totalorder %s17, 6
      %p161 = pnand %p159, %p160
      %p162 = pneg %p161
      // Predicated region
      $region9: #{tpu_custom_call.1} parent=5 // pred_check
        _
      $region10: #{tpu_custom_call.1} parent=5 // pred_check_branch
        %164 = sbr.rel (%p161) target = $region12
      $region11: #{tpu_custom_call.1} parent=5 // pred_region
        %s165 = ssub.s32 %s17, 1
        // Predicated region
        $region13: #{tpu_custom_call.1} parent=11 // pred_check
          %p166 = pneg %p83
        $region14: #{tpu_custom_call.1} parent=11 // pred_check_branch
          %168 = sbr.rel (%p166) target = $region16
        $region15: #{tpu_custom_call.1} parent=11 // pred_region
          %s169 = smul.u32 80, %s27
          %s171 = ssub.s32 5120, 5120
          %172 = vsyncadd [#allocation7], %s171
          %s173 = smul.addr %s169, 64
          %s174 = scalar_lea.hbm %s1, %s173
          %s175 = sshll.u32 [#allocation6], 4
          %s176 = int_to_ptr.vmem [resolvable:$true] %s175
          %181 = dma.hbm_to_vmem [thread:$0]  %s174, 5120, %s176, [#allocation7], 64, 64, 4
        $region16: #{tpu_custom_call.1} parent=11 // pred_fallthru
          _
        // Predicated region
        $region17: #{tpu_custom_call.1} parent=11 // pred_check
          %p182 = pneg %p104
        $region18: #{tpu_custom_call.1} parent=11 // pred_check_branch
          %184 = sbr.rel (%p182) target = $region20
        $region19: #{tpu_custom_call.1} parent=11 // pred_region
          %s186 = ssub.s32 2048, 2048
          %187 = vsyncadd [#allocation7], %s186
          %s188 = sshll.u32 [#allocation8], 4
          %s189 = int_to_ptr.vmem [resolvable:$true] %s188
          %194 = dma.hbm_to_vmem [thread:$0]  %s2, 2048, %s189, [#allocation7], 128, 128, 8
        $region20: #{tpu_custom_call.1} parent=11 // pred_fallthru
          _
        // Predicated region
        $region21: #{tpu_custom_call.1} parent=11 // pred_check
          %p195 = pneg %p125
        $region22: #{tpu_custom_call.1} parent=11 // pred_check_branch
          %197 = sbr.rel (%p195) target = $region24
        $region23: #{tpu_custom_call.1} parent=11 // pred_region
          _
        $region24: #{tpu_custom_call.1} parent=11 // pred_fallthru
          _
      $region12: #{tpu_custom_call.1} parent=5 // pred_fallthru
        _
      %p198 = scmp.lt.s32.totalorder %s17, 5
      // Predicated region
      $region25: #{tpu_custom_call.1} parent=5 // pred_check
        %p199 = pneg %p198
      $region26: #{tpu_custom_call.1} parent=5 // pred_check_branch
        %201 = sbr.rel (%p199) target = $region28
      $region27: #{tpu_custom_call.1} parent=5 // pred_region
        // Predicated region
        $region29: #{tpu_custom_call.1} parent=27 // pred_check
          %p202 = pneg %p51
        $region30: #{tpu_custom_call.1} parent=27 // pred_check_branch
          %204 = sbr.rel (%p202) target = $region32
        $region31: #{tpu_custom_call.1} parent=27 // pred_region
          %s205 = sand.u32 %s41, 1
          %s206 = scalar_lea.sflag [#allocation4], %s205
          %s207 = sand.u32 %s41, 1
          %s208 = smul.addr %s207, 320
          %s209 = scalar_lea.vmem [#allocation3], %s208
          %s210 = smul.u32 16, %s24
          %s211 = smul.u32 5, %s25
          %s213 = ssub.s32 5120, 5120
          %214 = vsyncadd %s206, %s213
          %s215 = smul.addr %s210, 5
          %s216 = sadd.s32 %s211, %s215
          %s217 = smul.addr %s216, 64
          %s218 = scalar_lea.hbm %s0, %s217
          %s219 = sshll.u32 %s209, 4
          %s220 = int_to_ptr.vmem [resolvable:$true] %s219
          %225 = dma.hbm_to_vmem [thread:$0]  %s218, 5120, %s220, %s206, 320, 320, 20
        $region32: #{tpu_custom_call.1} parent=27 // pred_fallthru
          _
      $region28: #{tpu_custom_call.1} parent=5 // pred_fallthru
        _
      %p226 = scmp.le.s32.totalorder 1, %s17
      %p227 = scmp.lt.s32.totalorder %s17, 6
      %p228 = pnand %p226, %p227
      %p229 = pneg %p228
      // Predicated region
      $region33: #{tpu_custom_call.1} parent=5 // pred_check
        _
      $region34: #{tpu_custom_call.1} parent=5 // pred_check_branch
        %231 = sbr.rel (%p228) target = $region36
      $region35: #{tpu_custom_call.1} parent=5 // pred_region
        %s232 = ssub.s32 %s17, 1
        %s233 = sand.u32 %s44, 1
        %s234 = scalar_lea.sflag [#allocation4], %s233
        %s235 = sand.u32 %s44, 1
        %s236 = smul.addr %s235, 320
        %s237 = scalar_lea.vmem [#allocation3], %s236
        // Predicated region
        $region37: #{tpu_custom_call.1} parent=35 // pred_check
          %p238 = pneg %p57
        $region38: #{tpu_custom_call.1} parent=35 // pred_check_branch
          %240 = sbr.rel (%p238) target = $region40
        $region39: #{tpu_custom_call.1} parent=35 // pred_region
          %241 = dma.done %s234, 5120
        $region40: #{tpu_custom_call.1} parent=35 // pred_fallthru
          _
        // Predicated region
        $region41: #{tpu_custom_call.1} parent=35 // pred_check
          %p242 = pneg %p83
        $region42: #{tpu_custom_call.1} parent=35 // pred_check_branch
          %244 = sbr.rel (%p242) target = $region44
        $region43: #{tpu_custom_call.1} parent=35 // pred_region
          %245 = dma.done [#allocation7], 5120
        $region44: #{tpu_custom_call.1} parent=35 // pred_fallthru
          _
        // Predicated region
        $region45: #{tpu_custom_call.1} parent=35 // pred_check
          %p246 = pneg %p104
        $region46: #{tpu_custom_call.1} parent=35 // pred_check_branch
          %248 = sbr.rel (%p246) target = $region48
        $region47: #{tpu_custom_call.1} parent=35 // pred_region
          %249 = dma.done [#allocation7], 2048
        $region48: #{tpu_custom_call.1} parent=35 // pred_fallthru
          _
        %s250 = sand.u32 %s44, 1
        %s251 = scalar_lea.sflag [#allocation4], %s250
        %s252 = sand.u32 %s44, 1
        %s253 = smul.addr %s252, 320
        %s254 = scalar_lea.vmem [#allocation3], %s253
        %p255 = pneg %p57
        %p256 = pneg %p54
        %p257 = pneg %p83
        %p258 = pneg %p80
        %p259 = pneg %p104
        %p260 = pneg %p101
        %p261 = pneg %p125
        %p262 = pneg %p122
        %p263 = pneg %p151
        %p264 = pneg %p148
        %s265 = sand.u32 %s138, 1
        %s266 = scalar_lea.sflag [#allocation5], %s265
        %s267 = sand.u32 %s138, 1
        %s268 = smul.addr %s267, 128
        %s269 = scalar_lea.vmem [#allocation9], %s268
        %s270 = smul.u32 16, %s26
        %s271 = smul.u32 5, %s27
        %s272 = smul.u32 80, %s27
        %s273 = smul.u32 16, %s26
        %p275 = scmp.eq.s32.totalorder %s27, 0
        // Predicated region
        $region49: #{tpu_custom_call.1} parent=35 // pred_check
          %p276 = pneg %p275
        $region50: #{tpu_custom_call.1} parent=35 // pred_check_branch
          %278 = sbr.rel (%p276) target = $region52
        $region51: #{tpu_custom_call.1} parent=35 // pred_region
          %279 = vst [vmem:[#allocation2] sm:$0xff] 0.0
          %280 = vst [vmem:[#allocation2 + $0x8] sm:$0xff] 0.0
          %281 = vst [vmem:[#allocation2 + $0x10] sm:$0xff] 0.0
          %282 = vst [vmem:[#allocation2 + $0x18] sm:$0xff] 0.0
          %283 = vst [vmem:[#allocation2 + $0x20] sm:$0xff] 0.0
          %284 = vst [vmem:[#allocation2 + $0x28] sm:$0xff] 0.0
          %285 = vst [vmem:[#allocation2 + $0x30] sm:$0xff] 0.0
          %286 = vst [vmem:[#allocation2 + $0x38] sm:$0xff] 0.0
          %287 = vst [vmem:[#allocation2 + $0x40] sm:$0xff] 0.0
          %288 = vst [vmem:[#allocation2 + $0x48] sm:$0xff] 0.0
          %289 = vst [vmem:[#allocation2 + $0x50] sm:$0xff] 0.0
          %290 = vst [vmem:[#allocation2 + $0x58] sm:$0xff] 0.0
          %291 = vst [vmem:[#allocation2 + $0x60] sm:$0xff] 0.0
          %292 = vst [vmem:[#allocation2 + $0x68] sm:$0xff] 0.0
          %293 = vst [vmem:[#allocation2 + $0x70] sm:$0xff] 0.0
          %294 = vst [vmem:[#allocation2 + $0x78] sm:$0xff] 0.0
        $region52: #{tpu_custom_call.1} parent=35 // pred_fallthru
          _
        %v295 = vld [vmem:[#allocation2] sm:$0xff]
        %v296 = vld [vmem:[#allocation2 + $0x8] sm:$0xff]
        %v297 = vld [vmem:[#allocation2 + $0x10] sm:$0xff]
        %v298 = vld [vmem:[#allocation2 + $0x18] sm:$0xff]
        %v299 = vld [vmem:[#allocation2 + $0x20] sm:$0xff]
        %v300 = vld [vmem:[#allocation2 + $0x28] sm:$0xff]
        %v301 = vld [vmem:[#allocation2 + $0x30] sm:$0xff]
        %v302 = vld [vmem:[#allocation2 + $0x38] sm:$0xff]
        %v303 = vld [vmem:[#allocation2 + $0x40] sm:$0xff]
        %v304 = vld [vmem:[#allocation2 + $0x48] sm:$0xff]
        %v305 = vld [vmem:[#allocation2 + $0x50] sm:$0xff]
        %v306 = vld [vmem:[#allocation2 + $0x58] sm:$0xff]
        %v307 = vld [vmem:[#allocation2 + $0x60] sm:$0xff]
        %v308 = vld [vmem:[#allocation2 + $0x68] sm:$0xff]
        %v309 = vld [vmem:[#allocation2 + $0x70] sm:$0xff]
        %v310 = vld [vmem:[#allocation2 + $0x78] sm:$0xff]
        %v311 = vld [vmem:[%s237] sm:$0xff]
        %v312 = vld [vmem:[%s237 + $0x8] sm:$0xff]
        %v313 = vld [vmem:[%s237 + $0x10] sm:$0xf]
        %v314 = vld [vmem:[%s237 + $0x14] sm:$0xff]
        %v315 = vld [vmem:[%s237 + $0x1c] sm:$0xff]
        %v316 = vld [vmem:[%s237 + $0x24] sm:$0xf]
        %v317 = vld [vmem:[%s237 + $0x28] sm:$0xff]
        %v318 = vld [vmem:[%s237 + $0x30] sm:$0xff]
        %v319 = vld [vmem:[%s237 + $0x38] sm:$0xf]
        %v320 = vld [vmem:[%s237 + $0x3c] sm:$0xff]
        %v321 = vld [vmem:[%s237 + $0x44] sm:$0xff]
        %v322 = vld [vmem:[%s237 + $0x4c] sm:$0xf]
        %v323 = vld [vmem:[%s237 + $0x50] sm:$0xff]
        %v324 = vld [vmem:[%s237 + $0x58] sm:$0xff]
        %v325 = vld [vmem:[%s237 + $0x60] sm:$0xf]
        %v326 = vld [vmem:[%s237 + $0x64] sm:$0xff]
        %v327 = vld [vmem:[%s237 + $0x6c] sm:$0xff]
        %v328 = vld [vmem:[%s237 + $0x74] sm:$0xf]
        %v329 = vld [vmem:[%s237 + $0x78] sm:$0xff]
        %v330 = vld [vmem:[%s237 + $0x80] sm:$0xff]
        %v331 = vld [vmem:[%s237 + $0x88] sm:$0xf]
        %v332 = vld [vmem:[%s237 + $0x8c] sm:$0xff]
        %v333 = vld [vmem:[%s237 + $0x94] sm:$0xff]
        %v334 = vld [vmem:[%s237 + $0x9c] sm:$0xf]
        %v335 = vld [vmem:[%s237 + $0xa0] sm:$0xff]
        %v336 = vld [vmem:[%s237 + $0xa8] sm:$0xff]
        %v337 = vld [vmem:[%s237 + $0xb0] sm:$0xf]
        %v338 = vld [vmem:[%s237 + $0xb4] sm:$0xff]
        %v339 = vld [vmem:[%s237 + $0xbc] sm:$0xff]
        %v340 = vld [vmem:[%s237 + $0xc4] sm:$0xf]
        %v341 = vld [vmem:[%s237 + $0xc8] sm:$0xff]
        %v342 = vld [vmem:[%s237 + $0xd0] sm:$0xff]
        %v343 = vld [vmem:[%s237 + $0xd8] sm:$0xf]
        %v344 = vld [vmem:[%s237 + $0xdc] sm:$0xff]
        %v345 = vld [vmem:[%s237 + $0xe4] sm:$0xff]
        %v346 = vld [vmem:[%s237 + $0xec] sm:$0xf]
        %v347 = vld [vmem:[%s237 + $0xf0] sm:$0xff]
        %v348 = vld [vmem:[%s237 + $0xf8] sm:$0xff]
        %v349 = vld [vmem:[%s237 + $0x100] sm:$0xf]
        %v350 = vld [vmem:[%s237 + $0x104] sm:$0xff]
        %v351 = vld [vmem:[%s237 + $0x10c] sm:$0xff]
        %v352 = vld [vmem:[%s237 + $0x114] sm:$0xf]
        %v353 = vld [vmem:[%s237 + $0x118] sm:$0xff]
        %v354 = vld [vmem:[%s237 + $0x120] sm:$0xff]
        %v355 = vld [vmem:[%s237 + $0x128] sm:$0xf]
        %v356 = vld [vmem:[%s237 + $0x12c] sm:$0xff]
        %v357 = vld [vmem:[%s237 + $0x134] sm:$0xff]
        %v358 = vld [vmem:[%s237 + $0x13c] sm:$0xf]
        %v359 = vld [vmem:[#allocation6] sm:$0xf]
        %v360 = vld [vmem:[#allocation6 + $0x4] sm:$0xf]
        %v361 = vld [vmem:[#allocation6 + $0x8] sm:$0xf]
        %v362 = vld [vmem:[#allocation6 + $0xc] sm:$0xf]
        %v363 = vld [vmem:[#allocation6 + $0x10] sm:$0xf]
        %v364 = vld [vmem:[#allocation6 + $0x14] sm:$0xf]
        %v365 = vld [vmem:[#allocation6 + $0x18] sm:$0xf]
        %v366 = vld [vmem:[#allocation6 + $0x1c] sm:$0xf]
        %v367 = vld [vmem:[#allocation6 + $0x20] sm:$0xf]
        %v368 = vld [vmem:[#allocation6 + $0x24] sm:$0xf]
        %v369 = vld [vmem:[#allocation6 + $0x28] sm:$0xf]
        %v370 = vld [vmem:[#allocation6 + $0x2c] sm:$0xf]
        %v371 = vld [vmem:[#allocation6 + $0x30] sm:$0xf]
        %v372 = vld [vmem:[#allocation6 + $0x34] sm:$0xf]
        %v373 = vld [vmem:[#allocation6 + $0x38] sm:$0xf]
        %v374 = vld [vmem:[#allocation6 + $0x3c] sm:$0xf]
        %v375 = vld [vmem:[#allocation6 + $0x40] sm:$0xf]
        %v376 = vld [vmem:[#allocation6 + $0x44] sm:$0xf]
        %v377 = vld [vmem:[#allocation6 + $0x48] sm:$0xf]
        %v378 = vld [vmem:[#allocation6 + $0x4c] sm:$0xf]
        %v379 = vld [vmem:[#allocation6 + $0x50] sm:$0xf]
        %v380 = vld [vmem:[#allocation6 + $0x54] sm:$0xf]
        %v381 = vld [vmem:[#allocation6 + $0x58] sm:$0xf]
        %v382 = vld [vmem:[#allocation6 + $0x5c] sm:$0xf]
        %v383 = vld [vmem:[#allocation6 + $0x60] sm:$0xf]
        %v384 = vld [vmem:[#allocation6 + $0x64] sm:$0xf]
        %v385 = vld [vmem:[#allocation6 + $0x68] sm:$0xf]
        %v386 = vld [vmem:[#allocation6 + $0x6c] sm:$0xf]
        %v387 = vld [vmem:[#allocation6 + $0x70] sm:$0xf]
        %v388 = vld [vmem:[#allocation6 + $0x74] sm:$0xf]
        %v389 = vld [vmem:[#allocation6 + $0x78] sm:$0xf]
        %v390 = vld [vmem:[#allocation6 + $0x7c] sm:$0xf]
        %v391 = vld [vmem:[#allocation6 + $0x80] sm:$0xf]
        %v392 = vld [vmem:[#allocation6 + $0x84] sm:$0xf]
        %v393 = vld [vmem:[#allocation6 + $0x88] sm:$0xf]
        %v394 = vld [vmem:[#allocation6 + $0x8c] sm:$0xf]
        %v395 = vld [vmem:[#allocation6 + $0x90] sm:$0xf]
        %v396 = vld [vmem:[#allocation6 + $0x94] sm:$0xf]
        %v397 = vld [vmem:[#allocation6 + $0x98] sm:$0xf]
        %v398 = vld [vmem:[#allocation6 + $0x9c] sm:$0xf]
        %v399 = vld [vmem:[#allocation6 + $0xa0] sm:$0xf]
        %v400 = vld [vmem:[#allocation6 + $0xa4] sm:$0xf]
        %v401 = vld [vmem:[#allocation6 + $0xa8] sm:$0xf]
        %v402 = vld [vmem:[#allocation6 + $0xac] sm:$0xf]
        %v403 = vld [vmem:[#allocation6 + $0xb0] sm:$0xf]
        %v404 = vld [vmem:[#allocation6 + $0xb4] sm:$0xf]
        %v405 = vld [vmem:[#allocation6 + $0xb8] sm:$0xf]
        %v406 = vld [vmem:[#allocation6 + $0xbc] sm:$0xf]
        %v407 = vld [vmem:[#allocation6 + $0xc0] sm:$0xf]
        %v408 = vld [vmem:[#allocation6 + $0xc4] sm:$0xf]
        %v409 = vld [vmem:[#allocation6 + $0xc8] sm:$0xf]
        %v410 = vld [vmem:[#allocation6 + $0xcc] sm:$0xf]
        %v411 = vld [vmem:[#allocation6 + $0xd0] sm:$0xf]
        %v412 = vld [vmem:[#allocation6 + $0xd4] sm:$0xf]
        %v413 = vld [vmem:[#allocation6 + $0xd8] sm:$0xf]
        %v414 = vld [vmem:[#allocation6 + $0xdc] sm:$0xf]
        %v415 = vld [vmem:[#allocation6 + $0xe0] sm:$0xf]
        %v416 = vld [vmem:[#allocation6 + $0xe4] sm:$0xf]
        %v417 = vld [vmem:[#allocation6 + $0xe8] sm:$0xf]
        %v418 = vld [vmem:[#allocation6 + $0xec] sm:$0xf]
        %v419 = vld [vmem:[#allocation6 + $0xf0] sm:$0xf]
        %v420 = vld [vmem:[#allocation6 + $0xf4] sm:$0xf]
        %v421 = vld [vmem:[#allocation6 + $0xf8] sm:$0xf]
        %v422 = vld [vmem:[#allocation6 + $0xfc] sm:$0xf]
        %v423 = vld [vmem:[#allocation6 + $0x100] sm:$0xf]
        %v424 = vld [vmem:[#allocation6 + $0x104] sm:$0xf]
        %v425 = vld [vmem:[#allocation6 + $0x108] sm:$0xf]
        %v426 = vld [vmem:[#allocation6 + $0x10c] sm:$0xf]
        %v427 = vld [vmem:[#allocation6 + $0x110] sm:$0xf]
        %v428 = vld [vmem:[#allocation6 + $0x114] sm:$0xf]
        %v429 = vld [vmem:[#allocation6 + $0x118] sm:$0xf]
        %v430 = vld [vmem:[#allocation6 + $0x11c] sm:$0xf]
        %v431 = vld [vmem:[#allocation6 + $0x120] sm:$0xf]
        %v432 = vld [vmem:[#allocation6 + $0x124] sm:$0xf]
        %v433 = vld [vmem:[#allocation6 + $0x128] sm:$0xf]
        %v434 = vld [vmem:[#allocation6 + $0x12c] sm:$0xf]
        %v435 = vld [vmem:[#allocation6 + $0x130] sm:$0xf]
        %v436 = vld [vmem:[#allocation6 + $0x134] sm:$0xf]
        %v437 = vld [vmem:[#allocation6 + $0x138] sm:$0xf]
        %v438 = vld [vmem:[#allocation6 + $0x13c] sm:$0xf]
        %v487 = vunpack.c.l.b16 %v311
        %v488 = vunpack.c.h.b16 %v311
        %v489 = vunpack.c.l.b16 %v312
        %v490 = vunpack.c.h.b16 %v312
        %v491 = vunpack.c.l.b16 %v313
        %v492 = vunpack.c.l.b16 %v314
        %v493 = vunpack.c.h.b16 %v314
        %v494 = vunpack.c.l.b16 %v315
        %v495 = vunpack.c.h.b16 %v315
        %v496 = vunpack.c.l.b16 %v316
        %v497 = vunpack.c.l.b16 %v317
        %v498 = vunpack.c.h.b16 %v317
        %v499 = vunpack.c.l.b16 %v318
        %v500 = vunpack.c.h.b16 %v318
        %v501 = vunpack.c.l.b16 %v319
        %v502 = vunpack.c.l.b16 %v320
        %v503 = vunpack.c.h.b16 %v320
        %v504 = vunpack.c.l.b16 %v321
        %v505 = vunpack.c.h.b16 %v321
        %v506 = vunpack.c.l.b16 %v322
        %v507 = vunpack.c.l.b16 %v323
        %v508 = vunpack.c.h.b16 %v323
        %v509 = vunpack.c.l.b16 %v324
        %v510 = vunpack.c.h.b16 %v324
        %v511 = vunpack.c.l.b16 %v325
        %v512 = vunpack.c.l.b16 %v326
        %v513 = vunpack.c.h.b16 %v326
        %v514 = vunpack.c.l.b16 %v327
        %v515 = vunpack.c.h.b16 %v327
        %v516 = vunpack.c.l.b16 %v328
        %v517 = vunpack.c.l.b16 %v329
        %v518 = vunpack.c.h.b16 %v329
        %v519 = vunpack.c.l.b16 %v330
        %v520 = vunpack.c.h.b16 %v330
        %v521 = vunpack.c.l.b16 %v331
        %v522 = vunpack.c.l.b16 %v332
        %v523 = vunpack.c.h.b16 %v332
        %v524 = vunpack.c.l.b16 %v333
        %v525 = vunpack.c.h.b16 %v333
        %v526 = vunpack.c.l.b16 %v334
        %v527 = vunpack.c.l.b16 %v335
        %v528 = vunpack.c.h.b16 %v335
        %v529 = vunpack.c.l.b16 %v336
        %v530 = vunpack.c.h.b16 %v336
        %v531 = vunpack.c.l.b16 %v337
        %v532 = vunpack.c.l.b16 %v338
        %v533 = vunpack.c.h.b16 %v338
        %v534 = vunpack.c.l.b16 %v339
        %v535 = vunpack.c.h.b16 %v339
        %v536 = vunpack.c.l.b16 %v340
        %v537 = vunpack.c.l.b16 %v341
        %v538 = vunpack.c.h.b16 %v341
        %v539 = vunpack.c.l.b16 %v342
        %v540 = vunpack.c.h.b16 %v342
        %v541 = vunpack.c.l.b16 %v343
        %v542 = vunpack.c.l.b16 %v344
        %v543 = vunpack.c.h.b16 %v344
        %v544 = vunpack.c.l.b16 %v345
        %v545 = vunpack.c.h.b16 %v345
        %v546 = vunpack.c.l.b16 %v346
        %v547 = vunpack.c.l.b16 %v347
        %v548 = vunpack.c.h.b16 %v347
        %v549 = vunpack.c.l.b16 %v348
        %v550 = vunpack.c.h.b16 %v348
        %v551 = vunpack.c.l.b16 %v349
        %v552 = vunpack.c.l.b16 %v350
        %v553 = vunpack.c.h.b16 %v350
        %v554 = vunpack.c.l.b16 %v351
        %v555 = vunpack.c.h.b16 %v351
        %v556 = vunpack.c.l.b16 %v352
        %v557 = vunpack.c.l.b16 %v353
        %v558 = vunpack.c.h.b16 %v353
        %v559 = vunpack.c.l.b16 %v354
        %v560 = vunpack.c.h.b16 %v354
        %v561 = vunpack.c.l.b16 %v355
        %v562 = vunpack.c.l.b16 %v356
        %v563 = vunpack.c.h.b16 %v356
        %v564 = vunpack.c.l.b16 %v357
        %v565 = vunpack.c.h.b16 %v357
        %v566 = vunpack.c.l.b16 %v358
        %v567 = vpack.c.b16 %v492, %v487
        %v568 = vpack.c.b16 %v493, %v488
        %v569 = vpack.c.b16 %v494, %v489
        %v570 = vpack.c.b16 %v495, %v490
        %v571 = vpack.c.b16 %v496, %v491
        %v572 = vpack.c.b16 %v502, %v497
        %v573 = vpack.c.b16 %v503, %v498
        %v574 = vpack.c.b16 %v504, %v499
        %v575 = vpack.c.b16 %v505, %v500
        %v576 = vpack.c.b16 %v506, %v501
        %v577 = vpack.c.b16 %v512, %v507
        %v578 = vpack.c.b16 %v513, %v508
        %v579 = vpack.c.b16 %v514, %v509
        %v580 = vpack.c.b16 %v515, %v510
        %v581 = vpack.c.b16 %v516, %v511
        %v582 = vpack.c.b16 %v522, %v517
        %v583 = vpack.c.b16 %v523, %v518
        %v584 = vpack.c.b16 %v524, %v519
        %v585 = vpack.c.b16 %v525, %v520
        %v586 = vpack.c.b16 %v526, %v521
        %v587 = vpack.c.b16 %v532, %v527
        %v588 = vpack.c.b16 %v533, %v528
        %v589 = vpack.c.b16 %v534, %v529
        %v590 = vpack.c.b16 %v535, %v530
        %v591 = vpack.c.b16 %v536, %v531
        %v592 = vpack.c.b16 %v542, %v537
        %v593 = vpack.c.b16 %v543, %v538
        %v594 = vpack.c.b16 %v544, %v539
        %v595 = vpack.c.b16 %v545, %v540
        %v596 = vpack.c.b16 %v546, %v541
        %v597 = vpack.c.b16 %v552, %v547
        %v598 = vpack.c.b16 %v553, %v548
        %v599 = vpack.c.b16 %v554, %v549
        %v600 = vpack.c.b16 %v555, %v550
        %v601 = vpack.c.b16 %v556, %v551
        %v602 = vpack.c.b16 %v562, %v557
        %v603 = vpack.c.b16 %v563, %v558
        %v604 = vpack.c.b16 %v564, %v559
        %v605 = vpack.c.b16 %v565, %v560
        %v606 = vpack.c.b16 %v566, %v561
        %v727 = vunpack.c.l.b16 %v359
        %v728 = vunpack.c.l.b16 %v360
        %v729 = vunpack.c.l.b16 %v361
        %v730 = vunpack.c.l.b16 %v362
        %v731 = vunpack.c.l.b16 %v363
        %v732 = vunpack.c.l.b16 %v364
        %v733 = vunpack.c.l.b16 %v365
        %v734 = vunpack.c.l.b16 %v366
        %v735 = vunpack.c.l.b16 %v367
        %v736 = vunpack.c.l.b16 %v368
        %v737 = vunpack.c.l.b16 %v369
        %v738 = vunpack.c.l.b16 %v370
        %v739 = vunpack.c.l.b16 %v371
        %v740 = vunpack.c.l.b16 %v372
        %v741 = vunpack.c.l.b16 %v373
        %v742 = vunpack.c.l.b16 %v374
        %v743 = vunpack.c.l.b16 %v375
        %v744 = vunpack.c.l.b16 %v376
        %v745 = vunpack.c.l.b16 %v377
        %v746 = vunpack.c.l.b16 %v378
        %v747 = vunpack.c.l.b16 %v379
        %v748 = vunpack.c.l.b16 %v380
        %v749 = vunpack.c.l.b16 %v381
        %v750 = vunpack.c.l.b16 %v382
        %v751 = vunpack.c.l.b16 %v383
        %v752 = vunpack.c.l.b16 %v384
        %v753 = vunpack.c.l.b16 %v385
        %v754 = vunpack.c.l.b16 %v386
        %v755 = vunpack.c.l.b16 %v387
        %v756 = vunpack.c.l.b16 %v388
        %v757 = vunpack.c.l.b16 %v389
        %v758 = vunpack.c.l.b16 %v390
        %v759 = vunpack.c.l.b16 %v391
        %v760 = vunpack.c.l.b16 %v392
        %v761 = vunpack.c.l.b16 %v393
        %v762 = vunpack.c.l.b16 %v394
        %v763 = vunpack.c.l.b16 %v395
        %v764 = vunpack.c.l.b16 %v396
        %v765 = vunpack.c.l.b16 %v397
        %v766 = vunpack.c.l.b16 %v398
        %v767 = vunpack.c.l.b16 %v399
        %v768 = vunpack.c.l.b16 %v400
        %v769 = vunpack.c.l.b16 %v401
        %v770 = vunpack.c.l.b16 %v402
        %v771 = vunpack.c.l.b16 %v403
        %v772 = vunpack.c.l.b16 %v404
        %v773 = vunpack.c.l.b16 %v405
        %v774 = vunpack.c.l.b16 %v406
        %v775 = vunpack.c.l.b16 %v407
        %v776 = vunpack.c.l.b16 %v408
        %v777 = vunpack.c.l.b16 %v409
        %v778 = vunpack.c.l.b16 %v410
        %v779 = vunpack.c.l.b16 %v411
        %v780 = vunpack.c.l.b16 %v412
        %v781 = vunpack.c.l.b16 %v413
        %v782 = vunpack.c.l.b16 %v414
        %v783 = vunpack.c.l.b16 %v415
        %v784 = vunpack.c.l.b16 %v416
        %v785 = vunpack.c.l.b16 %v417
        %v786 = vunpack.c.l.b16 %v418
        %v787 = vunpack.c.l.b16 %v419
        %v788 = vunpack.c.l.b16 %v420
        %v789 = vunpack.c.l.b16 %v421
        %v790 = vunpack.c.l.b16 %v422
        %v791 = vunpack.c.l.b16 %v423
        %v792 = vunpack.c.l.b16 %v424
        %v793 = vunpack.c.l.b16 %v425
        %v794 = vunpack.c.l.b16 %v426
        %v795 = vunpack.c.l.b16 %v427
        %v796 = vunpack.c.l.b16 %v428
        %v797 = vunpack.c.l.b16 %v429
        %v798 = vunpack.c.l.b16 %v430
        %v799 = vunpack.c.l.b16 %v431
        %v800 = vunpack.c.l.b16 %v432
        %v801 = vunpack.c.l.b16 %v433
        %v802 = vunpack.c.l.b16 %v434
        %v803 = vunpack.c.l.b16 %v435
        %v804 = vunpack.c.l.b16 %v436
        %v805 = vunpack.c.l.b16 %v437
        %v806 = vunpack.c.l.b16 %v438
        %v807 = vpack.c.b16 %v728, %v727
        %v808 = vpack.c.b16 %v730, %v729
        %v809 = vpack.c.b16 %v732, %v731
        %v810 = vpack.c.b16 %v734, %v733
        %v811 = vpack.c.b16 %v736, %v735
        %v812 = vpack.c.b16 %v738, %v737
        %v813 = vpack.c.b16 %v740, %v739
        %v814 = vpack.c.b16 %v742, %v741
        %v815 = vpack.c.b16 %v744, %v743
        %v816 = vpack.c.b16 %v746, %v745
        %v817 = vpack.c.b16 %v748, %v747
        %v818 = vpack.c.b16 %v750, %v749
        %v819 = vpack.c.b16 %v752, %v751
        %v820 = vpack.c.b16 %v754, %v753
        %v821 = vpack.c.b16 %v756, %v755
        %v822 = vpack.c.b16 %v758, %v757
        %v823 = vpack.c.b16 %v760, %v759
        %v824 = vpack.c.b16 %v762, %v761
        %v825 = vpack.c.b16 %v764, %v763
        %v826 = vpack.c.b16 %v766, %v765
        %v827 = vpack.c.b16 %v768, %v767
        %v828 = vpack.c.b16 %v770, %v769
        %v829 = vpack.c.b16 %v772, %v771
        %v830 = vpack.c.b16 %v774, %v773
        %v831 = vpack.c.b16 %v776, %v775
        %v832 = vpack.c.b16 %v778, %v777
        %v833 = vpack.c.b16 %v780, %v779
        %v834 = vpack.c.b16 %v782, %v781
        %v835 = vpack.c.b16 %v784, %v783
        %v836 = vpack.c.b16 %v786, %v785
        %v837 = vpack.c.b16 %v788, %v787
        %v838 = vpack.c.b16 %v790, %v789
        %v839 = vpack.c.b16 %v792, %v791
        %v840 = vpack.c.b16 %v794, %v793
        %v841 = vpack.c.b16 %v796, %v795
        %v842 = vpack.c.b16 %v798, %v797
        %v843 = vpack.c.b16 %v800, %v799
        %v844 = vpack.c.b16 %v802, %v801
        %v845 = vpack.c.b16 %v804, %v803
        %v846 = vpack.c.b16 %v806, %v805
        %887 = vmatprep.subr.bf16.mxu0 0
        %888 = vmatpush1.bf16.msra.mxu0 %v807
        %889 = vmatprep.subr.bf16.mxu0 0
        %890 = vmatpush1.bf16.msra.mxu0 %v808
        %891 = vmatprep.subr.bf16.mxu0 0
        %892 = vmatpush1.bf16.msra.mxu0 %v809
        %893 = vmatprep.subr.bf16.mxu0 0
        %894 = vmatpush1.bf16.msra.mxu0 %v810
        %895 = vmatprep.subr.bf16.mxu0 0
        %896 = vmatpush1.bf16.msra.mxu0 %v811
        %897 = vmatprep.subr.bf16.mxu0 0
        %898 = vmatpush1.bf16.msra.mxu0 %v812
        %899 = vmatprep.subr.bf16.mxu0 0
        %900 = vmatpush1.bf16.msra.mxu0 %v813
        %901 = vmatprep.subr.bf16.mxu0 0
        %902 = vmatpush1.bf16.msra.mxu0 %v814
        %903 = vmatprep.subr.bf16.mxu0 0
        %904 = vmatpush1.bf16.msra.mxu0 %v815
        %905 = vmatprep.subr.bf16.mxu0 0
        %906 = vmatpush1.bf16.msra.mxu0 %v816
        %907 = vmatprep.subr.bf16.mxu0 0
        %908 = vmatpush1.bf16.msra.mxu0 %v817
        %909 = vmatprep.subr.bf16.mxu0 0
        %910 = vmatpush1.bf16.msra.mxu0 %v818
        %911 = vmatprep.subr.bf16.mxu0 0
        %912 = vmatpush1.bf16.msra.mxu0 %v819
        %913 = vmatprep.subr.bf16.mxu0 0
        %914 = vmatpush1.bf16.msra.mxu0 %v820
        %915 = vmatprep.subr.bf16.mxu0 0
        %916 = vmatpush1.bf16.msra.mxu0 %v821
        %917 = vmatprep.subr.bf16.mxu0 0
        %918 = vmatpush1.bf16.msra.mxu0 %v822
        %919 = vmatprep.mubr.bf16.mxu0 %v568
        %920 = vmatmul.mubr.bf16.gmra.mrb[0].mxu0 %v567
        %v921 = vpop.f32.mrb[0].mxu0
        %v922 = vadd.f32 0.0, %v921
        %v923 = vpop.f32.mrb[0].mxu0
        %v924 = vpop.f32.mrb[0].mxu0
        %v925 = vadd.f32 0.0, %v924
        %v926 = vpop.f32.mrb[0].mxu0
        %927 = vmatprep.mubr.bf16.mxu0 %v573
        %928 = vmatmul.mubr.bf16.gmra.mrb[0].mxu0 %v572
        %v929 = vpop.f32.mrb[0].mxu0
        %v930 = vadd.f32 0.0, %v929
        %v931 = vpop.f32.mrb[0].mxu0
        %v932 = vpop.f32.mrb[0].mxu0
        %v933 = vadd.f32 0.0, %v932
        %v934 = vpop.f32.mrb[0].mxu0
        %935 = vmatprep.mubr.bf16.mxu0 %v578
        %936 = vmatmul.mubr.bf16.gmra.mrb[0].mxu0 %v577
        %v937 = vpop.f32.mrb[0].mxu0
        %v938 = vadd.f32 0.0, %v937
        %v939 = vpop.f32.mrb[0].mxu0
        %v940 = vpop.f32.mrb[0].mxu0
        %v941 = vadd.f32 0.0, %v940
        %v942 = vpop.f32.mrb[0].mxu0
        %943 = vmatprep.mubr.bf16.mxu0 %v583
        %944 = vmatmul.mubr.bf16.gmra.mrb[0].mxu0 %v582
        %v945 = vpop.f32.mrb[0].mxu0
        %v946 = vadd.f32 0.0, %v945
        %v947 = vpop.f32.mrb[0].mxu0
        %v948 = vpop.f32.mrb[0].mxu0
        %v949 = vadd.f32 0.0, %v948
        %v950 = vpop.f32.mrb[0].mxu0
        %951 = vmatprep.mubr.bf16.mxu0 %v588
        %952 = vmatmul.mubr.bf16.gmra.mrb[0].mxu0 %v587
        %v953 = vpop.f32.mrb[0].mxu0
        %v954 = vadd.f32 0.0, %v953
        %v955 = vpop.f32.mrb[0].mxu0
        %v956 = vpop.f32.mrb[0].mxu0
        %v957 = vadd.f32 0.0, %v956
        %v958 = vpop.f32.mrb[0].mxu0
        %959 = vmatprep.mubr.bf16.mxu0 %v593
        %960 = vmatmul.mubr.bf16.gmra.mrb[0].mxu0 %v592
        %v961 = vpop.f32.mrb[0].mxu0
        %v962 = vadd.f32 0.0, %v961
        %v963 = vpop.f32.mrb[0].mxu0
        %v964 = vpop.f32.mrb[0].mxu0
        %v965 = vadd.f32 0.0, %v964
        %v966 = vpop.f32.mrb[0].mxu0
        %967 = vmatprep.mubr.bf16.mxu0 %v598
        %968 = vmatmul.mubr.bf16.gmra.mrb[0].mxu0 %v597
        %v969 = vpop.f32.mrb[0].mxu0
        %v970 = vadd.f32 0.0, %v969
        %v971 = vpop.f32.mrb[0].mxu0
        %v972 = vpop.f32.mrb[0].mxu0
        %v973 = vadd.f32 0.0, %v972
        %v974 = vpop.f32.mrb[0].mxu0
        %975 = vmatprep.mubr.bf16.mxu0 %v603
        %976 = vmatmul.mubr.bf16.gmra.mrb[0].mxu0 %v602
        %v977 = vpop.f32.mrb[0].mxu0
        %v978 = vadd.f32 0.0, %v977
        %v979 = vpop.f32.mrb[0].mxu0
        %v980 = vpop.f32.mrb[0].mxu0
        %v981 = vadd.f32 0.0, %v980
        %v982 = vpop.f32.mrb[0].mxu0
        %983 = vdwg.mxu0
        %984 = vmatprep.subr.bf16.mxu0 0
        %985 = vmatpush1.bf16.msra.mxu0 %v823
        %986 = vmatprep.subr.bf16.mxu0 0
        %987 = vmatpush1.bf16.msra.mxu0 %v824
        %988 = vmatprep.subr.bf16.mxu0 0
        %989 = vmatpush1.bf16.msra.mxu0 %v825
        %990 = vmatprep.subr.bf16.mxu0 0
        %991 = vmatpush1.bf16.msra.mxu0 %v826
        %992 = vmatprep.subr.bf16.mxu0 0
        %993 = vmatpush1.bf16.msra.mxu0 %v827
        %994 = vmatprep.subr.bf16.mxu0 0
        %995 = vmatpush1.bf16.msra.mxu0 %v828
        %996 = vmatprep.subr.bf16.mxu0 0
        %997 = vmatpush1.bf16.msra.mxu0 %v829
        %998 = vmatprep.subr.bf16.mxu0 0
        %999 = vmatpush1.bf16.msra.mxu0 %v830
        %1000 = vmatprep.subr.bf16.mxu0 0
        %1001 = vmatpush1.bf16.msra.mxu0 %v831
        %1002 = vmatprep.subr.bf16.mxu0 0
        %1003 = vmatpush1.bf16.msra.mxu0 %v832
        %1004 = vmatprep.subr.bf16.mxu0 0
        %1005 = vmatpush1.bf16.msra.mxu0 %v833
        %1006 = vmatprep.subr.bf16.mxu0 0
        %1007 = vmatpush1.bf16.msra.mxu0 %v834
        %1008 = vmatprep.subr.bf16.mxu0 0
        %1009 = vmatpush1.bf16.msra.mxu0 %v835
        %1010 = vmatprep.subr.bf16.mxu0 0
        %1011 = vmatpush1.bf16.msra.mxu0 %v836
        %1012 = vmatprep.subr.bf16.mxu0 0
        %1013 = vmatpush1.bf16.msra.mxu0 %v837
        %1014 = vmatprep.subr.bf16.mxu0 0
        %1015 = vmatpush1.bf16.msra.mxu0 %v838
        %1016 = vmatprep.mubr.bf16.mxu0 %v570
        %1017 = vmatmul.mubr.bf16.gmra.mrb[0].mxu0 %v569
        %v1018 = vpop.f32.mrb[0].mxu0
        %v1019 = vadd.f32 %v922, %v1018
        %v1020 = vpop.f32.mrb[0].mxu0
        %v1021 = vpop.f32.mrb[0].mxu0
        %v1022 = vadd.f32 %v925, %v1021
        %v1023 = vpop.f32.mrb[0].mxu0
        %1024 = vmatprep.mubr.bf16.mxu0 %v575
        %1025 = vmatmul.mubr.bf16.gmra.mrb[0].mxu0 %v574
        %v1026 = vpop.f32.mrb[0].mxu0
        %v1027 = vadd.f32 %v930, %v1026
        %v1028 = vpop.f32.mrb[0].mxu0
        %v1029 = vpop.f32.mrb[0].mxu0
        %v1030 = vadd.f32 %v933, %v1029
        %v1031 = vpop.f32.mrb[0].mxu0
        %1032 = vmatprep.mubr.bf16.mxu0 %v580
        %1033 = vmatmul.mubr.bf16.gmra.mrb[0].mxu0 %v579
        %v1034 = vpop.f32.mrb[0].mxu0
        %v1035 = vadd.f32 %v938, %v1034
        %v1036 = vpop.f32.mrb[0].mxu0
        %v1037 = vpop.f32.mrb[0].mxu0
        %v1038 = vadd.f32 %v941, %v1037
        %v1039 = vpop.f32.mrb[0].mxu0
        %1040 = vmatprep.mubr.bf16.mxu0 %v585
        %1041 = vmatmul.mubr.bf16.gmra.mrb[0].mxu0 %v584
        %v1042 = vpop.f32.mrb[0].mxu0
        %v1043 = vadd.f32 %v946, %v1042
        %v1044 = vpop.f32.mrb[0].mxu0
        %v1045 = vpop.f32.mrb[0].mxu0
        %v1046 = vadd.f32 %v949, %v1045
        %v1047 = vpop.f32.mrb[0].mxu0
        %1048 = vmatprep.mubr.bf16.mxu0 %v590
        %1049 = vmatmul.mubr.bf16.gmra.mrb[0].mxu0 %v589
        %v1050 = vpop.f32.mrb[0].mxu0
        %v1051 = vadd.f32 %v954, %v1050
        %v1052 = vpop.f32.mrb[0].mxu0
        %v1053 = vpop.f32.mrb[0].mxu0
        %v1054 = vadd.f32 %v957, %v1053
        %v1055 = vpop.f32.mrb[0].mxu0
        %1056 = vmatprep.mubr.bf16.mxu0 %v595
        %1057 = vmatmul.mubr.bf16.gmra.mrb[0].mxu0 %v594
        %v1058 = vpop.f32.mrb[0].mxu0
        %v1059 = vadd.f32 %v962, %v1058
        %v1060 = vpop.f32.mrb[0].mxu0
        %v1061 = vpop.f32.mrb[0].mxu0
        %v1062 = vadd.f32 %v965, %v1061
        %v1063 = vpop.f32.mrb[0].mxu0
        %1064 = vmatprep.mubr.bf16.mxu0 %v600
        %1065 = vmatmul.mubr.bf16.gmra.mrb[0].mxu0 %v599
        %v1066 = vpop.f32.mrb[0].mxu0
        %v1067 = vadd.f32 %v970, %v1066
        %v1068 = vpop.f32.mrb[0].mxu0
        %v1069 = vpop.f32.mrb[0].mxu0
        %v1070 = vadd.f32 %v973, %v1069
        %v1071 = vpop.f32.mrb[0].mxu0
        %1072 = vmatprep.mubr.bf16.mxu0 %v605
        %1073 = vmatmul.mubr.bf16.gmra.mrb[0].mxu0 %v604
        %v1074 = vpop.f32.mrb[0].mxu0
        %v1075 = vadd.f32 %v978, %v1074
        %v1076 = vpop.f32.mrb[0].mxu0
        %v1077 = vpop.f32.mrb[0].mxu0
        %v1078 = vadd.f32 %v981, %v1077
        %v1079 = vpop.f32.mrb[0].mxu0
        %1080 = vdwg.mxu0
        %1081 = vmatprep.subr.bf16.mxu0 0
        %1082 = vmatpush1.bf16.msra.mxu0 %v839
        %1083 = vmatprep.subr.bf16.mxu0 0
        %1084 = vmatpush1.bf16.msra.mxu0 %v840
        %1085 = vmatprep.subr.bf16.mxu0 0
        %1086 = vmatpush1.bf16.msra.mxu0 %v841
        %1087 = vmatprep.subr.bf16.mxu0 0
        %1088 = vmatpush1.bf16.msra.mxu0 %v842
        %1089 = vmatprep.subr.bf16.mxu0 0
        %1090 = vmatpush1.bf16.msra.mxu0 %v843
        %1091 = vmatprep.subr.bf16.mxu0 0
        %1092 = vmatpush1.bf16.msra.mxu0 %v844
        %1093 = vmatprep.subr.bf16.mxu0 0
        %1094 = vmatpush1.bf16.msra.mxu0 %v845
        %1095 = vmatprep.subr.bf16.mxu0 0
        %1096 = vmatpush1.bf16.msra.mxu0 %v846
        %1097 = vmatprep.subr.bf16.mxu0 0
        %1098 = vmatpush1.bf16.msra.mxu0 0
        %1099 = vmatprep.subr.bf16.mxu0 0
        %1100 = vmatpush1.bf16.msra.mxu0 0
        %1101 = vmatprep.subr.bf16.mxu0 0
        %1102 = vmatpush1.bf16.msra.mxu0 0
        %1103 = vmatprep.subr.bf16.mxu0 0
        %1104 = vmatpush1.bf16.msra.mxu0 0
        %1105 = vmatprep.subr.bf16.mxu0 0
        %1106 = vmatpush1.bf16.msra.mxu0 0
        %1107 = vmatprep.subr.bf16.mxu0 0
        %1108 = vmatpush1.bf16.msra.mxu0 0
        %1109 = vmatprep.subr.bf16.mxu0 0
        %1110 = vmatpush1.bf16.msra.mxu0 0
        %1111 = vmatprep.subr.bf16.mxu0 0
        %1112 = vmatpush1.bf16.msra.mxu0 0
        %1113 = vmatprep.mubr.bf16.mxu0 0
        %1114 = vmatmul.mubr.bf16.gmra.mrb[0].mxu0 %v571
        %v1115 = vpop.f32.mrb[0].mxu0
        %v1116 = vadd.f32 %v1019, %v1115
        %v1117 = vpop.f32.mrb[0].mxu0
        %v1118 = vpop.f32.mrb[0].mxu0
        %v1119 = vadd.f32 %v1022, %v1118
        %v1120 = vpop.f32.mrb[0].mxu0
        %1121 = vmatprep.mubr.bf16.mxu0 0
        %1122 = vmatmul.mubr.bf16.gmra.mrb[0].mxu0 %v576
        %v1123 = vpop.f32.mrb[0].mxu0
        %v1124 = vadd.f32 %v1027, %v1123
        %v1125 = vpop.f32.mrb[0].mxu0
        %v1126 = vpop.f32.mrb[0].mxu0
        %v1127 = vadd.f32 %v1030, %v1126
        %v1128 = vpop.f32.mrb[0].mxu0
        %1129 = vmatprep.mubr.bf16.mxu0 0
        %1130 = vmatmul.mubr.bf16.gmra.mrb[0].mxu0 %v581
        %v1131 = vpop.f32.mrb[0].mxu0
        %v1132 = vadd.f32 %v1035, %v1131
        %v1133 = vpop.f32.mrb[0].mxu0
        %v1134 = vpop.f32.mrb[0].mxu0
        %v1135 = vadd.f32 %v1038, %v1134
        %v1136 = vpop.f32.mrb[0].mxu0
        %1137 = vmatprep.mubr.bf16.mxu0 0
        %1138 = vmatmul.mubr.bf16.gmra.mrb[0].mxu0 %v586
        %v1139 = vpop.f32.mrb[0].mxu0
        %v1140 = vadd.f32 %v1043, %v1139
        %v1141 = vpop.f32.mrb[0].mxu0
        %v1142 = vpop.f32.mrb[0].mxu0
        %v1143 = vadd.f32 %v1046, %v1142
        %v1144 = vpop.f32.mrb[0].mxu0
        %1145 = vmatprep.mubr.bf16.mxu0 0
        %1146 = vmatmul.mubr.bf16.gmra.mrb[0].mxu0 %v591
        %v1147 = vpop.f32.mrb[0].mxu0
        %v1148 = vadd.f32 %v1051, %v1147
        %v1149 = vpop.f32.mrb[0].mxu0
        %v1150 = vpop.f32.mrb[0].mxu0
        %v1151 = vadd.f32 %v1054, %v1150
        %v1152 = vpop.f32.mrb[0].mxu0
        %1153 = vmatprep.mubr.bf16.mxu0 0
        %1154 = vmatmul.mubr.bf16.gmra.mrb[0].mxu0 %v596
        %v1155 = vpop.f32.mrb[0].mxu0
        %v1156 = vadd.f32 %v1059, %v1155
        %v1157 = vpop.f32.mrb[0].mxu0
        %v1158 = vpop.f32.mrb[0].mxu0
        %v1159 = vadd.f32 %v1062, %v1158
        %v1160 = vpop.f32.mrb[0].mxu0
        %1161 = vmatprep.mubr.bf16.mxu0 0
        %1162 = vmatmul.mubr.bf16.gmra.mrb[0].mxu0 %v601
        %v1163 = vpop.f32.mrb[0].mxu0
        %v1164 = vadd.f32 %v1067, %v1163
        %v1165 = vpop.f32.mrb[0].mxu0
        %v1166 = vpop.f32.mrb[0].mxu0
        %v1167 = vadd.f32 %v1070, %v1166
        %v1168 = vpop.f32.mrb[0].mxu0
        %1169 = vmatprep.mubr.bf16.mxu0 0
        %1170 = vmatmul.mubr.bf16.gmra.mrb[0].mxu0 %v606
        %v1171 = vpop.f32.mrb[0].mxu0
        %v1172 = vadd.f32 %v1075, %v1171
        %v1173 = vpop.f32.mrb[0].mxu0
        %v1174 = vpop.f32.mrb[0].mxu0
        %v1175 = vadd.f32 %v1078, %v1174
        %v1176 = vpop.f32.mrb[0].mxu0
        %1177 = vdwg.mxu0
        %v1178 = vadd.f32 %v295, %v1116
        %v1179 = vadd.f32 %v296, %v1119
        %v1180 = vadd.f32 %v297, %v1124
        %v1181 = vadd.f32 %v298, %v1127
        %v1182 = vadd.f32 %v299, %v1132
        %v1183 = vadd.f32 %v300, %v1135
        %v1184 = vadd.f32 %v301, %v1140
        %v1185 = vadd.f32 %v302, %v1143
        %v1186 = vadd.f32 %v303, %v1148
        %v1187 = vadd.f32 %v304, %v1151
        %v1188 = vadd.f32 %v305, %v1156
        %v1189 = vadd.f32 %v306, %v1159
        %v1190 = vadd.f32 %v307, %v1164
        %v1191 = vadd.f32 %v308, %v1167
        %v1192 = vadd.f32 %v309, %v1172
        %v1193 = vadd.f32 %v310, %v1175
        %1194 = vst [vmem:[#allocation2] sm:$0xff] %v1178
        %1195 = vst [vmem:[#allocation2 + $0x8] sm:$0xff] %v1179
        %1196 = vst [vmem:[#allocation2 + $0x10] sm:$0xff] %v1180
        %1197 = vst [vmem:[#allocation2 + $0x18] sm:$0xff] %v1181
        %1198 = vst [vmem:[#allocation2 + $0x20] sm:$0xff] %v1182
        %1199 = vst [vmem:[#allocation2 + $0x28] sm:$0xff] %v1183
        %1200 = vst [vmem:[#allocation2 + $0x30] sm:$0xff] %v1184
        %1201 = vst [vmem:[#allocation2 + $0x38] sm:$0xff] %v1185
        %1202 = vst [vmem:[#allocation2 + $0x40] sm:$0xff] %v1186
        %1203 = vst [vmem:[#allocation2 + $0x48] sm:$0xff] %v1187
        %1204 = vst [vmem:[#allocation2 + $0x50] sm:$0xff] %v1188
        %1205 = vst [vmem:[#allocation2 + $0x58] sm:$0xff] %v1189
        %1206 = vst [vmem:[#allocation2 + $0x60] sm:$0xff] %v1190
        %1207 = vst [vmem:[#allocation2 + $0x68] sm:$0xff] %v1191
        %1208 = vst [vmem:[#allocation2 + $0x70] sm:$0xff] %v1192
        %1209 = vst [vmem:[#allocation2 + $0x78] sm:$0xff] %v1193
        // Predicated region
        $region53: #{tpu_custom_call.1} parent=35 // pred_check
          %p1210 = pneg %p275
        $region54: #{tpu_custom_call.1} parent=35 // pred_check_branch
          %1212 = sbr.rel (%p1210) target = $region56
        $region55: #{tpu_custom_call.1} parent=35 // pred_region
          %v1213 = vld [vmem:[#allocation2] sm:$0xff]
          %v1214 = vld [vmem:[#allocation2 + $0x8] sm:$0xff]
          %v1215 = vld [vmem:[#allocation2 + $0x10] sm:$0xff]
          %v1216 = vld [vmem:[#allocation2 + $0x18] sm:$0xff]
          %v1217 = vld [vmem:[#allocation2 + $0x20] sm:$0xff]
          %v1218 = vld [vmem:[#allocation2 + $0x28] sm:$0xff]
          %v1219 = vld [vmem:[#allocation2 + $0x30] sm:$0xff]
          %v1220 = vld [vmem:[#allocation2 + $0x38] sm:$0xff]
          %v1221 = vld [vmem:[#allocation2 + $0x40] sm:$0xff]
          %v1222 = vld [vmem:[#allocation2 + $0x48] sm:$0xff]
          %v1223 = vld [vmem:[#allocation2 + $0x50] sm:$0xff]
          %v1224 = vld [vmem:[#allocation2 + $0x58] sm:$0xff]
          %v1225 = vld [vmem:[#allocation2 + $0x60] sm:$0xff]
          %v1226 = vld [vmem:[#allocation2 + $0x68] sm:$0xff]
          %v1227 = vld [vmem:[#allocation2 + $0x70] sm:$0xff]
          %v1228 = vld [vmem:[#allocation2 + $0x78] sm:$0xff]
          %v1229 = vld [vmem:[#allocation8] sm:$0xff]
          %v1230 = vld [vmem:[#allocation8 + $0x8] sm:$0xff]
          %v1231 = vld [vmem:[#allocation8 + $0x10] sm:$0xff]
          %v1232 = vld [vmem:[#allocation8 + $0x18] sm:$0xff]
          %v1233 = vld [vmem:[#allocation8 + $0x20] sm:$0xff]
          %v1234 = vld [vmem:[#allocation8 + $0x28] sm:$0xff]
          %v1235 = vld [vmem:[#allocation8 + $0x30] sm:$0xff]
          %v1236 = vld [vmem:[#allocation8 + $0x38] sm:$0xff]
          %v1237 = vld [vmem:[#allocation8 + $0x40] sm:$0xff]
          %v1238 = vld [vmem:[#allocation8 + $0x48] sm:$0xff]
          %v1239 = vld [vmem:[#allocation8 + $0x50] sm:$0xff]
          %v1240 = vld [vmem:[#allocation8 + $0x58] sm:$0xff]
          %v1241 = vld [vmem:[#allocation8 + $0x60] sm:$0xff]
          %v1242 = vld [vmem:[#allocation8 + $0x68] sm:$0xff]
          %v1243 = vld [vmem:[#allocation8 + $0x70] sm:$0xff]
          %v1244 = vld [vmem:[#allocation8 + $0x78] sm:$0xff]
          %v1245 = vld [vmem:[%s3] sm:$0x1]
          %v1247 = vlaneseq
          %v1248 = vshrl.u32 %v1247, 7
          %v1249 = vsub.s32 0, %v1248
          %v1250 = vrot.slane %v1245, %v1249
          %1252 = vmatprep.subr.mxu0 0.0
          %1253 = vmatpush1.msra.mxu0 %v1229
          %1254 = vmatprep.subr.mxu0 0.0
          %1255 = vmatpush1.msra.mxu0 %v1230
          %1256 = vmatprep.subr.mxu0 0.0
          %1257 = vmatpush1.msra.mxu0 %v1231
          %1258 = vmatprep.subr.mxu0 0.0
          %1259 = vmatpush1.msra.mxu0 %v1232
          %1260 = vmatprep.subr.mxu0 0.0
          %1261 = vmatpush1.msra.mxu0 %v1233
          %1262 = vmatprep.subr.mxu0 0.0
          %1263 = vmatpush1.msra.mxu0 %v1234
          %1264 = vmatprep.subr.mxu0 0.0
          %1265 = vmatpush1.msra.mxu0 %v1235
          %1266 = vmatprep.subr.mxu0 0.0
          %1267 = vmatpush1.msra.mxu0 %v1236
          %1268 = vmatprep.subr.mxu0 0.0
          %1269 = vmatpush1.msra.mxu0 %v1237
          %1270 = vmatprep.subr.mxu0 0.0
          %1271 = vmatpush1.msra.mxu0 %v1238
          %1272 = vmatprep.subr.mxu0 0.0
          %1273 = vmatpush1.msra.mxu0 %v1239
          %1274 = vmatprep.subr.mxu0 0.0
          %1275 = vmatpush1.msra.mxu0 %v1240
          %1276 = vmatprep.subr.mxu0 0.0
          %1277 = vmatpush1.msra.mxu0 %v1241
          %1278 = vmatprep.subr.mxu0 0.0
          %1279 = vmatpush1.msra.mxu0 %v1242
          %1280 = vmatprep.subr.mxu0 0.0
          %1281 = vmatpush1.msra.mxu0 %v1243
          %1282 = vmatprep.subr.mxu0 0.0
          %1283 = vmatpush1.msra.mxu0 %v1244
          %1284 = vmatprep.subr.mxu0 0.0
          %1285 = vmatpush1.msra.mxu0 0.0
          %1286 = vmatprep.subr.mxu0 0.0
          %1287 = vmatpush1.msra.mxu0 0.0
          %1288 = vmatprep.subr.mxu0 0.0
          %1289 = vmatpush1.msra.mxu0 0.0
          %1290 = vmatprep.subr.mxu0 0.0
          %1291 = vmatpush1.msra.mxu0 0.0
          %1292 = vmatprep.subr.mxu0 0.0
          %1293 = vmatpush1.msra.mxu0 0.0
          %1294 = vmatprep.subr.mxu0 0.0
          %1295 = vmatpush1.msra.mxu0 0.0
          %1296 = vmatprep.subr.mxu0 0.0
          %1297 = vmatpush1.msra.mxu0 0.0
          %1298 = vmatprep.subr.mxu0 0.0
          %1299 = vmatpush1.msra.mxu0 0.0
          %1300 = vmatprep.subr.mxu0 0.0
          %1301 = vmatpush1.msra.mxu0 0.0
          %1302 = vmatprep.subr.mxu0 0.0
          %1303 = vmatpush1.msra.mxu0 0.0
          %1304 = vmatprep.subr.mxu0 0.0
          %1305 = vmatpush1.msra.mxu0 0.0
          %1306 = vmatprep.subr.mxu0 0.0
          %1307 = vmatpush1.msra.mxu0 0.0
          %1308 = vmatprep.subr.mxu0 0.0
          %1309 = vmatpush1.msra.mxu0 0.0
          %1310 = vmatprep.subr.mxu0 0.0
          %1311 = vmatpush1.msra.mxu0 0.0
          %1312 = vmatprep.subr.mxu0 0.0
          %1313 = vmatpush1.msra.mxu0 0.0
          %1314 = vmatprep.subr.mxu0 0.0
          %1315 = vmatpush1.msra.mxu0 0.0
          %1316 = vmatprep.mubr.f32.mxu0 0.0
          %1317 = vmatmul.mubr.f32.gmra.mrb[0].mxu0 %v1213
          %v1318 = vpop.f32.mrb[0].mxu0
          %v1319 = vadd.f32 %v1250, %v1318
          %v1320 = vpop.f32.mrb[0].mxu0
          %1321 = vmatprep.mubr.f32.mxu0 0.0
          %1322 = vmatmul.mubr.f32.gmra.mrb[0].mxu0 %v1214
          %v1323 = vpop.f32.mrb[0].mxu0
          %v1324 = vadd.f32 %v1250, %v1323
          %v1325 = vpop.f32.mrb[0].mxu0
          %1326 = vmatprep.mubr.f32.mxu0 0.0
          %1327 = vmatmul.mubr.f32.gmra.mrb[0].mxu0 %v1215
          %v1328 = vpop.f32.mrb[0].mxu0
          %v1329 = vadd.f32 %v1250, %v1328
          %v1330 = vpop.f32.mrb[0].mxu0
          %1331 = vmatprep.mubr.f32.mxu0 0.0
          %1332 = vmatmul.mubr.f32.gmra.mrb[0].mxu0 %v1216
          %v1333 = vpop.f32.mrb[0].mxu0
          %v1334 = vadd.f32 %v1250, %v1333
          %v1335 = vpop.f32.mrb[0].mxu0
          %1336 = vmatprep.mubr.f32.mxu0 0.0
          %1337 = vmatmul.mubr.f32.gmra.mrb[0].mxu0 %v1217
          %v1338 = vpop.f32.mrb[0].mxu0
          %v1339 = vadd.f32 %v1250, %v1338
          %v1340 = vpop.f32.mrb[0].mxu0
          %1341 = vmatprep.mubr.f32.mxu0 0.0
          %1342 = vmatmul.mubr.f32.gmra.mrb[0].mxu0 %v1218
          %v1343 = vpop.f32.mrb[0].mxu0
          %v1344 = vadd.f32 %v1250, %v1343
          %v1345 = vpop.f32.mrb[0].mxu0
          %1346 = vmatprep.mubr.f32.mxu0 0.0
          %1347 = vmatmul.mubr.f32.gmra.mrb[0].mxu0 %v1219
          %v1348 = vpop.f32.mrb[0].mxu0
          %v1349 = vadd.f32 %v1250, %v1348
          %v1350 = vpop.f32.mrb[0].mxu0
          %1351 = vmatprep.mubr.f32.mxu0 0.0
          %1352 = vmatmul.mubr.f32.gmra.mrb[0].mxu0 %v1220
          %v1353 = vpop.f32.mrb[0].mxu0
          %v1354 = vadd.f32 %v1250, %v1353
          %v1355 = vpop.f32.mrb[0].mxu0
          %1356 = vmatprep.mubr.f32.mxu0 0.0
          %1357 = vmatmul.mubr.f32.gmra.mrb[0].mxu0 %v1221
          %v1358 = vpop.f32.mrb[0].mxu0
          %v1359 = vadd.f32 %v1250, %v1358
          %v1360 = vpop.f32.mrb[0].mxu0
          %1361 = vmatprep.mubr.f32.mxu0 0.0
          %1362 = vmatmul.mubr.f32.gmra.mrb[0].mxu0 %v1222
          %v1363 = vpop.f32.mrb[0].mxu0
          %v1364 = vadd.f32 %v1250, %v1363
          %v1365 = vpop.f32.mrb[0].mxu0
          %1366 = vmatprep.mubr.f32.mxu0 0.0
          %1367 = vmatmul.mubr.f32.gmra.mrb[0].mxu0 %v1223
          %v1368 = vpop.f32.mrb[0].mxu0
          %v1369 = vadd.f32 %v1250, %v1368
          %v1370 = vpop.f32.mrb[0].mxu0
          %1371 = vmatprep.mubr.f32.mxu0 0.0
          %1372 = vmatmul.mubr.f32.gmra.mrb[0].mxu0 %v1224
          %v1373 = vpop.f32.mrb[0].mxu0
          %v1374 = vadd.f32 %v1250, %v1373
          %v1375 = vpop.f32.mrb[0].mxu0
          %1376 = vmatprep.mubr.f32.mxu0 0.0
          %1377 = vmatmul.mubr.f32.gmra.mrb[0].mxu0 %v1225
          %v1378 = vpop.f32.mrb[0].mxu0
          %v1379 = vadd.f32 %v1250, %v1378
          %v1380 = vpop.f32.mrb[0].mxu0
          %1381 = vmatprep.mubr.f32.mxu0 0.0
          %1382 = vmatmul.mubr.f32.gmra.mrb[0].mxu0 %v1226
          %v1383 = vpop.f32.mrb[0].mxu0
          %v1384 = vadd.f32 %v1250, %v1383
          %v1385 = vpop.f32.mrb[0].mxu0
          %1386 = vmatprep.mubr.f32.mxu0 0.0
          %1387 = vmatmul.mubr.f32.gmra.mrb[0].mxu0 %v1227
          %v1388 = vpop.f32.mrb[0].mxu0
          %v1389 = vadd.f32 %v1250, %v1388
          %v1390 = vpop.f32.mrb[0].mxu0
          %1391 = vmatprep.mubr.f32.mxu0 0.0
          %1392 = vmatmul.mubr.f32.gmra.mrb[0].mxu0 %v1228
          %v1393 = vpop.f32.mrb[0].mxu0
          %v1394 = vadd.f32 %v1250, %v1393
          %v1395 = vpop.f32.mrb[0].mxu0
          %1396 = vdwg.mxu0
          %1397 = vst [vmem:[%s269] sm:$0xff] %v1319
          %1398 = vst [vmem:[%s269 + $0x8] sm:$0xff] %v1324
          %1399 = vst [vmem:[%s269 + $0x10] sm:$0xff] %v1329
          %1400 = vst [vmem:[%s269 + $0x18] sm:$0xff] %v1334
          %1401 = vst [vmem:[%s269 + $0x20] sm:$0xff] %v1339
          %1402 = vst [vmem:[%s269 + $0x28] sm:$0xff] %v1344
          %1403 = vst [vmem:[%s269 + $0x30] sm:$0xff] %v1349
          %1404 = vst [vmem:[%s269 + $0x38] sm:$0xff] %v1354
          %1405 = vst [vmem:[%s269 + $0x40] sm:$0xff] %v1359
          %1406 = vst [vmem:[%s269 + $0x48] sm:$0xff] %v1364
          %1407 = vst [vmem:[%s269 + $0x50] sm:$0xff] %v1369
          %1408 = vst [vmem:[%s269 + $0x58] sm:$0xff] %v1374
          %1409 = vst [vmem:[%s269 + $0x60] sm:$0xff] %v1379
          %1410 = vst [vmem:[%s269 + $0x68] sm:$0xff] %v1384
          %1411 = vst [vmem:[%s269 + $0x70] sm:$0xff] %v1389
          %1412 = vst [vmem:[%s269 + $0x78] sm:$0xff] %v1394
        $region56: #{tpu_custom_call.1} parent=35 // pred_fallthru
          _
        %s1413 = sand.u32 %s138, 1
        %s1414 = scalar_lea.sflag [#allocation5], %s1413
        %s1415 = sand.u32 %s138, 1
        %s1416 = smul.addr %s1415, 128
        %s1417 = scalar_lea.vmem [#allocation9], %s1416
        // Predicated region
        $region57: #{tpu_custom_call.1} parent=35 // pred_check
          %p1418 = pneg %p148
        $region58: #{tpu_custom_call.1} parent=35 // pred_check_branch
          %1420 = sbr.rel (%p1418) target = $region60
        $region59: #{tpu_custom_call.1} parent=35 // pred_region
          %s1421 = smul.u32 16, %s26
          %s1423 = ssub.s32 2048, 2048
          %1424 = vsyncadd %s1414, %s1423
          %s1425 = smul.addr %s1421, 128
          %s1426 = scalar_lea.hbm %s4, %s1425
          %s1427 = sshll.u32 %s1417, 4
          %s1428 = int_to_ptr.vmem [resolvable:$true] %s1427
          %1433 = dma.vmem_to_hbm [thread:$0]  %s1428, 2048, %s1426, %s1414, 128, 128, 8
        $region60: #{tpu_custom_call.1} parent=35 // pred_fallthru
          _
      $region36: #{tpu_custom_call.1} parent=5 // pred_fallthru
        _
      %p1434 = scmp.le.s32.totalorder 2, %s17
      // Predicated region
      $region61: #{tpu_custom_call.1} parent=5 // pred_check
        %p1435 = pneg %p1434
      $region62: #{tpu_custom_call.1} parent=5 // pred_check_branch
        %1437 = sbr.rel (%p1435) target = $region64
      $region63: #{tpu_custom_call.1} parent=5 // pred_region
        %s1438 = ssub.s32 %s17, 2
        // Predicated region
        $region65: #{tpu_custom_call.1} parent=63 // pred_check
          %p1439 = pneg %p154
        $region66: #{tpu_custom_call.1} parent=63 // pred_check_branch
          %1441 = sbr.rel (%p1439) target = $region68
        $region67: #{tpu_custom_call.1} parent=63 // pred_region
          %s1442 = sand.u32 %s139, 1
          %s1443 = scalar_lea.sflag [#allocation5], %s1442
          %s1444 = sand.u32 %s139, 1
          %s1445 = smul.addr %s1444, 128
          %s1446 = scalar_lea.vmem [#allocation9], %s1445
          %1447 = dma.done %s1443, 2048
        $region68: #{tpu_custom_call.1} parent=63 // pred_fallthru
          _
      $region64: #{tpu_custom_call.1} parent=5 // pred_fallthru
        _
    $region6: #{tpu_custom_call.1} parent=1 // loop_footer
      %s21 = sadd.s32 1, %s17
    $region7: #{tpu_custom_call.1} parent=1 // loop_footer_branch
      %16 = sbr.rel target = $region3
    $region8: #{tpu_custom_call.1} parent=1 // loop_exit
      _
    %1448 = vsyncpa [#allocation4], 1
    %s1449 = scalar_lea.sflag [#allocation4], 1
    %1450 = vsyncpa %s1449, 1
    %1451 = vsyncpa [#allocation7], 1
    %1452 = vsyncpa [#allocation5], 1
    %s1453 = scalar_lea.sflag [#allocation5], 1
    %1454 = vsyncpa %s1453, 1

</llo_original>
